<compile_context>
chip_gen: v5e
topology: v5e:2x2
jax: 0.10.0
libtpu: 0.0.40
codegen_flags: <defaults>
</compile_context>

<pallas_src>
import jax
import jax.numpy as jnp
from jax import lax
from jax.experimental import pallas as pl
from jax.experimental.pallas import tpu as pltpu


def _round_up(x, m):
    return (x + m - 1) // m * m


def _netp_tanh_kernel(x_ref, w1_ref, b1_ref, w2_ref, b2_ref, o_ref):
    # Layer 1: MXU matmul in the operands' native dtype, f32 accumulation.
    h = jnp.dot(x_ref[...], w1_ref[...],
                preferred_element_type=jnp.float32)            # [tb, k_pad] f32
    h = jnp.tanh(h + b1_ref[...])                              # EUP tanh, f32 epilogue

    # Layer 2: contract k_pad (the minor dim of BOTH operands) so the result is
    # [q_pad, tb] with the batch on the lane axis -> lane-dense output stores.
    y = lax.dot_general(w2_ref[...], h,
                        dimension_numbers=(((1,), (1,)), ((), ())),
                        preferred_element_type=jnp.float32)    # [q_pad, tb] f32
    o_ref[...] = (y + b2_ref[...]).astype(o_ref.dtype)


def netp_tanh_forward(x, w1, b1, w2, b2, *, batch_tile=None):
    """Fused forward pass of Netp_tanh.

    x:  [..., p]   (arbitrary leading batch dims, like torch.nn.Linear)
    w1: [p, k]     (transposed vs. torch l1.weight, which is [k, p])
    b1: [k]
    w2: [q, k]     (same layout as torch l2.weight)
    b2: [q]
    returns [..., q]
    """
    orig_shape = x.shape
    p = orig_shape[-1]
    x2 = x.reshape(-1, p)
    n = x2.shape[0]
    k = w1.shape[1]
    q = w2.shape[0]

    if batch_tile is None:
        # ~1024-row tiles: many pipelined grid steps at large N, KB-scale VMEM
        # per buffer (safe on v7x's 64 MiB), still a single tile for tiny N.
        batch_tile = min(1024, _round_up(n, 128))
    assert batch_tile % 128 == 0, "batch_tile must be a multiple of 128"

    n_pad = _round_up(n, batch_tile)
    if n_pad != n:
        x2 = jnp.pad(x2, ((0, n_pad - n), (0, 0)))

    # Pad k to a lane-friendly size and q to a sublane-friendly size; hoist all
    # weight/bias casts out of the kernel (done once, on tiny arrays).
    k_pad = _round_up(k, 128)
    q_pad = _round_up(q, 8)
    w1_p = jnp.zeros((p, k_pad), w1.dtype).at[:, :k].set(w1)           # native dtype -> MXU
    b1_p = jnp.zeros((1, k_pad), jnp.float32).at[0, :k].set(b1.astype(jnp.float32))
    w2_p = jnp.zeros((q_pad, k_pad), jnp.float32).at[:q, :k].set(w2.astype(jnp.float32))
    b2_p = jnp.zeros((q_pad, 1), jnp.float32).at[:q, 0].set(b2.astype(jnp.float32))

    grid = (n_pad // batch_tile,)

    out_t = pl.pallas_call(
        _netp_tanh_kernel,
        out_shape=jax.ShapeDtypeStruct((q_pad, n_pad), x.dtype),
        grid_spec=pltpu.PrefetchScalarGridSpec(
            num_scalar_prefetch=0,
            grid=grid,
            in_specs=[
                pl.BlockSpec((batch_tile, p), lambda i: (i, 0)),   # x tile (pipelined)
                pl.BlockSpec((p, k_pad), lambda i: (0, 0)),        # w1 (resident)
                pl.BlockSpec((1, k_pad), lambda i: (0, 0)),        # b1 (resident)
                pl.BlockSpec((q_pad, k_pad), lambda i: (0, 0)),    # w2 (resident)
                pl.BlockSpec((q_pad, 1), lambda i: (0, 0)),        # b2 (resident)
            ],
            out_specs=pl.BlockSpec((q_pad, batch_tile), lambda i: (0, i)),
        ),
        compiler_params=pltpu.CompilerParams(
            dimension_semantics=("parallel",),
        ),
    )(x2, w1_p, b1_p, w2_p, b2_p)

    # Tiny [q, N] slab -> [N, q]; layout plumbing in the caller.
    out = out_t[:q, :n].T
    return out.reshape(orig_shape[:-1] + (q,))


def init_params(key, p, k=50, q=1, dtype=jnp.float32):
    """Deterministic PyTorch-style Linear init: U(-1/sqrt(fan_in), 1/sqrt(fan_in))."""
    k1, k2, k3, k4 = jax.random.split(key, 4)
    bound1 = 1.0 / (p ** 0.5)
    bound2 = 1.0 / (k ** 0.5)
    w1 = jax.random.uniform(k1, (p, k), dtype, -bound1, bound1)   # torch l1.weight.T
    b1 = jax.random.uniform(k2, (k,), dtype, -bound1, bound1)
    w2 = jax.random.uniform(k3, (q, k), dtype, -bound2, bound2)   # torch l2.weight
    b2 = jax.random.uniform(k4, (q,), dtype, -bound2, bound2)
    return w1, b1, w2, b2


if __name__ == "__main__":
    key = jax.random.PRNGKey(0)
    kx, kp, kx2 = jax.random.split(key, 3)

    p, k, q = 32, 50, 1
    w1, b1, w2, b2 = init_params(kp, p, k, q)

    # Small case (single tile, matches the module's default shapes).
    batch = 8
    x = jax.random.normal(kx, (batch, p), jnp.float32)
    out = jax.block_until_ready(netp_tanh_forward(x, w1, b1, w2, b2))
    ref = jnp.tanh(x @ w1 + b1) @ w2.T + b2
    assert out.shape == (batch, q)
    assert jnp.allclose(out, ref, atol=1e-5, rtol=1e-5), float(jnp.max(jnp.abs(out - ref)))

    # Multi-tile + ragged-batch case (exercises padding and the pipelined grid).
    batch2 = 1500
    x_big = jax.random.normal(kx2, (batch2, p), jnp.float32)
    out2 = jax.block_until_ready(netp_tanh_forward(x_big, w1, b1, w2, b2))
    ref2 = jnp.tanh(x_big @ w1 + b1) @ w2.T + b2
    assert out2.shape == (batch2, q)
    assert jnp.allclose(out2, ref2, atol=1e-5, rtol=1e-5), float(jnp.max(jnp.abs(out2 - ref2)))

    print("KERNEL_OK")
</pallas_src>

<mosaic_0001>
module attributes {stable_mosaic.version = 11 : i64} {
  func.func @_netp_tanh_kernel(%arg0: i32, %arg1: memref<128x32xf32, #tpu.memory_space<vmem>>, %arg2: memref<32x128xf32, #tpu.memory_space<vmem>>, %arg3: memref<1x128xf32, #tpu.memory_space<vmem>>, %arg4: memref<8x128xf32, #tpu.memory_space<vmem>>, %arg5: memref<8x1xf32, #tpu.memory_space<vmem>>, %arg6: memref<8x128xf32, #tpu.memory_space<vmem>>) attributes {dimension_semantics = [#tpu.dimension_semantics<parallel>], iteration_bounds = array<i64: 1>, scalar_prefetch = 0 : i64, scratch_operands = 0 : i64, tpu.core_type = #tpu.core_type<tc>, window_params = [{transform_indices = @transform_0, window_bounds = array<i64: 128, 32>}, {pipeline_mode = #tpu.pipeline_mode<synchronous>, transform_indices = @transform_1, window_bounds = array<i64: 32, 128>}, {pipeline_mode = #tpu.pipeline_mode<synchronous>, transform_indices = @transform_2, window_bounds = array<i64: 1, 128>}, {pipeline_mode = #tpu.pipeline_mode<synchronous>, transform_indices = @transform_3, window_bounds = array<i64: 8, 128>}, {pipeline_mode = #tpu.pipeline_mode<synchronous>, transform_indices = @transform_4, window_bounds = array<i64: 8, 1>}, {transform_indices = @transform_5, window_bounds = array<i64: 8, 128>}]} {
    %c0 = arith.constant 0 : index
    %c0_0 = arith.constant 0 : index
    %0 = vector.load %arg1[%c0, %c0_0] : memref<128x32xf32, #tpu.memory_space<vmem>>, vector<128x32xf32>
    %c0_1 = arith.constant 0 : index
    %c0_2 = arith.constant 0 : index
    %1 = vector.load %arg2[%c0_1, %c0_2] : memref<32x128xf32, #tpu.memory_space<vmem>>, vector<32x128xf32>
    %cst = arith.constant dense<0.000000e+00> : vector<128x128xf32>
    %2 = tpu.matmul %0, %1, %cst {dimension_numbers = #tpu.dot_dimension_numbers<[1], [0], [0], [1], [0, 0, 1, 1], [], []>} : vector<128x32xf32>, vector<32x128xf32>, vector<128x128xf32> -> vector<128x128xf32>
    %c0_3 = arith.constant 0 : index
    %c0_4 = arith.constant 0 : index
    %3 = vector.load %arg3[%c0_3, %c0_4] : memref<1x128xf32, #tpu.memory_space<vmem>>, vector<1x128xf32>
    %4 = vector.broadcast %3 : vector<1x128xf32> to vector<128x128xf32>
    %5 = arith.addf %2, %4 : vector<128x128xf32>
    %6 = math.tanh %5 : vector<128x128xf32>
    %c0_5 = arith.constant 0 : index
    %c0_6 = arith.constant 0 : index
    %7 = vector.load %arg4[%c0_5, %c0_6] : memref<8x128xf32, #tpu.memory_space<vmem>>, vector<8x128xf32>
    %cst_7 = arith.constant dense<0.000000e+00> : vector<8x128xf32>
    %8 = tpu.matmul %7, %6, %cst_7 {dimension_numbers = #tpu.dot_dimension_numbers<[1], [1], [0], [0], [0, 0, 1, 0], [], []>} : vector<8x128xf32>, vector<128x128xf32>, vector<8x128xf32> -> vector<8x128xf32>
    %c0_8 = arith.constant 0 : index
    %c0_9 = arith.constant 0 : index
    %9 = vector.load %arg5[%c0_8, %c0_9] : memref<8x1xf32, #tpu.memory_space<vmem>>, vector<8x1xf32>
    %10 = vector.broadcast %9 : vector<8x1xf32> to vector<8x128xf32>
    %11 = arith.addf %8, %10 : vector<8x128xf32>
    %c0_10 = arith.constant 0 : index
    %c0_11 = arith.constant 0 : index
    %12 = vector.load %arg6[%c0_10, %c0_11] : memref<8x128xf32, #tpu.memory_space<vmem>>, vector<8x128xf32>
    tpu.vector_store %arg6[%c0_10, %c0_11], %11 {strides = array<i32>} : memref<8x128xf32, #tpu.memory_space<vmem>>, vector<8x128xf32>,
    return
  }
  func.func @transform_0(%arg0: i32) -> (i32, i32) {
    %c0_i32 = arith.constant 0 : i32
    %c0_i32_0 = arith.constant 0 : i32
    return %arg0, %c0_i32 : i32, i32
  }
  func.func @transform_1(%arg0: i32) -> (i32, i32) {
    %c0_i32 = arith.constant 0 : i32
    %c0_i32_0 = arith.constant 0 : i32
    %c0_i32_1 = arith.constant 0 : i32
    return %c0_i32, %c0_i32_0 : i32, i32
  }
  func.func @transform_2(%arg0: i32) -> (i32, i32) {
    %c0_i32 = arith.constant 0 : i32
    %c0_i32_0 = arith.constant 0 : i32
    %c0_i32_1 = arith.constant 0 : i32
    return %c0_i32, %c0_i32_0 : i32, i32
  }
  func.func @transform_3(%arg0: i32) -> (i32, i32) {
    %c0_i32 = arith.constant 0 : i32
    %c0_i32_0 = arith.constant 0 : i32
    %c0_i32_1 = arith.constant 0 : i32
    return %c0_i32, %c0_i32_0 : i32, i32
  }
  func.func @transform_4(%arg0: i32) -> (i32, i32) {
    %c0_i32 = arith.constant 0 : i32
    %c0_i32_0 = arith.constant 0 : i32
    %c0_i32_1 = arith.constant 0 : i32
    return %c0_i32, %c0_i32_0 : i32, i32
  }
  func.func @transform_5(%arg0: i32) -> (i32, i32) {
    %c0_i32 = arith.constant 0 : i32
    %c0_i32_0 = arith.constant 0 : i32
    return %c0_i32, %arg0 : i32, i32
  }
}

</mosaic_0001>

<llo_original>
// kernel: tpu_custom_call.1
$region0: #{tpu_custom_call.1}
  #allocation0 [shape = 'u32[]', space=smem, size = 0x4, offset = 0x4, fixed_abs, tag = 'smem constant byte address 0x4 - core index']
  #allocation1 [shape = 'u32[72,128]{1,0:T(1,128)}', space=vmem, size = 0x9000, scoped, tag = 'internal scratch']
  %s0 = inlined_call_operand.vmem [shape: f32[128,32], index: 0, kind: input, shape index: {}]
  %s1 = inlined_call_operand.vmem [shape: f32[32,128], index: 1, kind: input, shape index: {}]
  %s2 = inlined_call_operand.vmem [shape: f32[1,128], index: 2, kind: input, shape index: {}]
  %s3 = inlined_call_operand.vmem [shape: f32[8,128], index: 3, kind: input, shape index: {}]
  %s4 = inlined_call_operand.vmem [shape: f32[8,1], index: 4, kind: input, shape index: {}]
  %s5 = inlined_call_operand.hbm [shape: f32[8,128], index: 5, kind: output, shape index: {}]
  %s6 = sld [smem:[#allocation0]]
  $region30: #{tpu_custom_call.1} parent=0
    _
  %s8 = ssub.s32 1, %s6
  %s9 = scalar_select 0, %s8, %s6
  $region1: #{tpu_custom_call.1} parent=0
    #allocation2 [shape = 'u8[4096]{0}', space=vmem, size = 0x1000, scoped, tag = 'output window, operand 0, single buffered']
    #allocation3 [shape = 's32[1]{0}', space=sflag, size = 0x4, scoped, tag = 'scoped memory for tpu_custom_call.1']
    %10 = vsyncpa [#allocation3], 0
    // Predicated region
    $region2: #{tpu_custom_call.1} parent=1 // pred_check
      _
    $region3: #{tpu_custom_call.1} parent=1 // pred_check_branch
      %12 = sbr.rel (0) target = $region5
    $region4: #{tpu_custom_call.1} parent=1 // pred_region
      _
    $region5: #{tpu_custom_call.1} parent=1 // pred_fallthru
      _
    // Predicated region
    $region6: #{tpu_custom_call.1} parent=1 // pred_check
      _
    $region7: #{tpu_custom_call.1} parent=1 // pred_check_branch
      %14 = sbr.rel (0) target = $region9
    $region8: #{tpu_custom_call.1} parent=1 // pred_region
      _
    $region9: #{tpu_custom_call.1} parent=1 // pred_fallthru
      _
    // Predicated region
    $region10: #{tpu_custom_call.1} parent=1 // pred_check
      _
    $region11: #{tpu_custom_call.1} parent=1 // pred_check_branch
      %16 = sbr.rel (0) target = $region13
    $region12: #{tpu_custom_call.1} parent=1 // pred_region
      _
    $region13: #{tpu_custom_call.1} parent=1 // pred_fallthru
      _
    // Predicated region
    $region14: #{tpu_custom_call.1} parent=1 // pred_check
      _
    $region15: #{tpu_custom_call.1} parent=1 // pred_check_branch
      %18 = sbr.rel (0) target = $region17
    $region16: #{tpu_custom_call.1} parent=1 // pred_region
      _
    $region17: #{tpu_custom_call.1} parent=1 // pred_fallthru
      _
    // Predicated region
    $region18: #{tpu_custom_call.1} parent=1 // pred_check
      _
    $region19: #{tpu_custom_call.1} parent=1 // pred_check_branch
      %20 = sbr.rel (0) target = $region21
    $region20: #{tpu_custom_call.1} parent=1 // pred_region
      _
    $region21: #{tpu_custom_call.1} parent=1 // pred_fallthru
      _
    %v21 = vld [vmem:[%s0] sm:$0xff]
    %v22 = vld [vmem:[%s0 + $0x8] sm:$0xff]
    %v23 = vld [vmem:[%s0 + $0x10] sm:$0xff]
    %v24 = vld [vmem:[%s0 + $0x18] sm:$0xff]
    %v25 = vld [vmem:[%s0 + $0x20] sm:$0xff]
    %v26 = vld [vmem:[%s0 + $0x28] sm:$0xff]
    %v27 = vld [vmem:[%s0 + $0x30] sm:$0xff]
    %v28 = vld [vmem:[%s0 + $0x38] sm:$0xff]
    %v29 = vld [vmem:[%s0 + $0x40] sm:$0xff]
    %v30 = vld [vmem:[%s0 + $0x48] sm:$0xff]
    %v31 = vld [vmem:[%s0 + $0x50] sm:$0xff]
    %v32 = vld [vmem:[%s0 + $0x58] sm:$0xff]
    %v33 = vld [vmem:[%s0 + $0x60] sm:$0xff]
    %v34 = vld [vmem:[%s0 + $0x68] sm:$0xff]
    %v35 = vld [vmem:[%s0 + $0x70] sm:$0xff]
    %v36 = vld [vmem:[%s0 + $0x78] sm:$0xff]
    %v37 = vld [vmem:[%s1] sm:$0xff]
    %v38 = vld [vmem:[%s1 + $0x8] sm:$0xff]
    %v39 = vld [vmem:[%s1 + $0x10] sm:$0xff]
    %v40 = vld [vmem:[%s1 + $0x18] sm:$0xff]
    %v41 = vld [vmem:[%s2] sm:$0x1]
    %v43 = vperm.slane %v41, 0
    %vm45 = vcmask 261120
    %v47 = vsel %vm45, %v21, 0
    %v50 = vsel %vm45, %v22, 0
    %v53 = vsel %vm45, %v23, 0
    %v56 = vsel %vm45, %v24, 0
    %v59 = vsel %vm45, %v25, 0
    %v62 = vsel %vm45, %v26, 0
    %v65 = vsel %vm45, %v27, 0
    %v68 = vsel %vm45, %v28, 0
    %v71 = vsel %vm45, %v29, 0
    %v74 = vsel %vm45, %v30, 0
    %v77 = vsel %vm45, %v31, 0
    %v80 = vsel %vm45, %v32, 0
    %v83 = vsel %vm45, %v33, 0
    %v86 = vsel %vm45, %v34, 0
    %v89 = vsel %vm45, %v35, 0
    %v92 = vsel %vm45, %v36, 0
    %94 = vmatpush.msra.mxu0 0.0
    %95 = vmatpush.msra.mxu0 0.0
    %96 = vmatpush.msra.mxu0 0.0
    %97 = vmatpush.msra.mxu0 0.0
    %98 = vmatpush.msra.mxu0 0.0
    %99 = vmatpush.msra.mxu0 0.0
    %100 = vmatpush.msra.mxu0 0.0
    %101 = vmatpush.msra.mxu0 0.0
    %102 = vmatpush.msra.mxu0 0.0
    %103 = vmatpush.msra.mxu0 0.0
    %104 = vmatpush.msra.mxu0 0.0
    %105 = vmatpush.msra.mxu0 0.0
    %106 = vmatpush.msra.mxu0 %v40
    %107 = vmatpush.msra.mxu0 %v39
    %108 = vmatpush.msra.mxu0 %v38
    %109 = vmatpush.msra.mxu0 %v37
    %110 = vmatmul.f32.gmra.mxu0 %v47
    %v111 = vpop.f32.mrf.mxu0
    %v112 = vadd.f32 %v43, %v111
    %113 = vmatmul.f32.gmra.mxu0 %v50
    %v114 = vpop.f32.mrf.mxu0
    %v115 = vadd.f32 %v43, %v114
    %116 = vmatmul.f32.gmra.mxu0 %v53
    %v117 = vpop.f32.mrf.mxu0
    %v118 = vadd.f32 %v43, %v117
    %119 = vmatmul.f32.gmra.mxu0 %v56
    %v120 = vpop.f32.mrf.mxu0
    %v121 = vadd.f32 %v43, %v120
    %122 = vmatmul.f32.gmra.mxu0 %v59
    %v123 = vpop.f32.mrf.mxu0
    %v124 = vadd.f32 %v43, %v123
    %125 = vmatmul.f32.gmra.mxu0 %v62
    %v126 = vpop.f32.mrf.mxu0
    %v127 = vadd.f32 %v43, %v126
    %128 = vmatmul.f32.gmra.mxu0 %v65
    %v129 = vpop.f32.mrf.mxu0
    %v130 = vadd.f32 %v43, %v129
    %131 = vmatmul.f32.gmra.mxu0 %v68
    %v132 = vpop.f32.mrf.mxu0
    %v133 = vadd.f32 %v43, %v132
    %134 = vmatmul.f32.gmra.mxu0 %v71
    %v135 = vpop.f32.mrf.mxu0
    %v136 = vadd.f32 %v43, %v135
    %137 = vmatmul.f32.gmra.mxu0 %v74
    %v138 = vpop.f32.mrf.mxu0
    %v139 = vadd.f32 %v43, %v138
    %140 = vmatmul.f32.gmra.mxu0 %v77
    %v141 = vpop.f32.mrf.mxu0
    %v142 = vadd.f32 %v43, %v141
    %143 = vmatmul.f32.gmra.mxu0 %v80
    %v144 = vpop.f32.mrf.mxu0
    %v145 = vadd.f32 %v43, %v144
    %146 = vmatmul.f32.gmra.mxu0 %v83
    %v147 = vpop.f32.mrf.mxu0
    %v148 = vadd.f32 %v43, %v147
    %149 = vmatmul.f32.gmra.mxu0 %v86
    %v150 = vpop.f32.mrf.mxu0
    %v151 = vadd.f32 %v43, %v150
    %152 = vmatmul.f32.gmra.mxu0 %v89
    %v153 = vpop.f32.mrf.mxu0
    %v154 = vadd.f32 %v43, %v153
    %155 = vmatmul.f32.gmra.mxu0 %v92
    %v156 = vpop.f32.mrf.mxu0
    %v157 = vadd.f32 %v43, %v156
    %158 = vdwg.mxu0
    %v159 = vtanh.pop %v112
    %v160 = vtanh.pop %v115
    %v161 = vtanh.pop %v118
    %v162 = vtanh.pop %v121
    %v163 = vtanh.pop %v124
    %v164 = vtanh.pop %v127
    %v165 = vtanh.pop %v130
    %v166 = vtanh.pop %v133
    %v167 = vtanh.pop %v136
    %v168 = vtanh.pop %v139
    %v169 = vtanh.pop %v142
    %v170 = vtanh.pop %v145
    %v171 = vtanh.pop %v148
    %v172 = vtanh.pop %v151
    %v173 = vtanh.pop %v154
    %v174 = vtanh.pop %v157
    %v175 = vld [vmem:[%s3] sm:$0xff]
    %v176 = vld [vmem:[%s4] sm:$0xff]
    %178 = vset.pattern.permute.xlu0 0
    %179 = vperm.xlu0 %178, %v176
    %v180 = vpop.permute.xlu0 %179
    %182 = vmatpush.xpose.msra.mxu0 %v174
    %183 = vmatpush.xpose.msra.mxu0 %v173
    %184 = vmatpush.xpose.msra.mxu0 %v172
    %185 = vmatpush.xpose.msra.mxu0 %v171
    %186 = vmatpush.xpose.msra.mxu0 %v170
    %187 = vmatpush.xpose.msra.mxu0 %v169
    %188 = vmatpush.xpose.msra.mxu0 %v168
    %189 = vmatpush.xpose.msra.mxu0 %v167
    %190 = vmatpush.xpose.msra.mxu0 %v166
    %191 = vmatpush.xpose.msra.mxu0 %v165
    %192 = vmatpush.xpose.msra.mxu0 %v164
    %193 = vmatpush.xpose.msra.mxu0 %v163
    %194 = vmatpush.xpose.msra.mxu0 %v162
    %195 = vmatpush.xpose.msra.mxu0 %v161
    %196 = vmatpush.xpose.msra.mxu0 %v160
    %197 = vmatpush.xpose.msra.mxu0 %v159
    %198 = vmatmul.f32.gmra.mxu0 %v175
    %v199 = vpop.f32.mrf.mxu0
    %v200 = vadd.f32 %v180, %v199
    %201 = vdwg.mxu0
    %202 = vst [vmem:[#allocation2] sm:$0xff] %v200
    // Predicated region
    $region22: #{tpu_custom_call.1} parent=1 // pred_check
      _
    $region23: #{tpu_custom_call.1} parent=1 // pred_check_branch
      %204 = sbr.rel (0) target = $region25
    $region24: #{tpu_custom_call.1} parent=1 // pred_region
      %206 = vsyncadd [#allocation3], 0
      %s208 = sshll.u32 [#allocation2], 4
      %s209 = int_to_ptr.vmem [resolvable:$true] %s208
      %s210 = sshll.u32 %s5, 4
      %s211 = int_to_ptr.hbm [resolvable:$true] %s210
      %213 = dma.vmem_to_hbm [thread:$0]  %s209, 128, %s211, [#allocation3]
    $region25: #{tpu_custom_call.1} parent=1 // pred_fallthru
      _
    // Predicated region
    $region26: #{tpu_custom_call.1} parent=1 // pred_check
      _
    $region27: #{tpu_custom_call.1} parent=1 // pred_check_branch
      %215 = sbr.rel (0) target = $region29
    $region28: #{tpu_custom_call.1} parent=1 // pred_region
      %217 = dma.done [#allocation3], 128
    $region29: #{tpu_custom_call.1} parent=1 // pred_fallthru
      _
    %218 = vsyncpa [#allocation3], 1

</llo_original>
